<compile_context>
chip_gen: v5e
topology: v5e:2x2
jax: 0.10.0
libtpu: 0.0.40
codegen_flags: <defaults>
</compile_context>

<pallas_src>
import functools
import math

import jax
import jax.numpy as jnp
from jax import lax
from jax.experimental import pallas as pl
from jax.experimental.pallas import tpu as pltpu

_EPS = 1e-5
_HIGHEST = lax.Precision.HIGHEST

_COMPILER_PARAMS = pltpu.CompilerParams(
    dimension_semantics=("parallel",),
    vmem_limit_bytes=48 * 1024 * 1024,
)


# --------------------------------------------------------------------------- #
# Kernels
# --------------------------------------------------------------------------- #
def _ln_packed_kernel(x_ref, r_ref, bt_ref, w_ref, b_ref, o_ref, *, inv_c):
    """Lane-dense packed path.  Block: (TR, W), W = G*C, multiple of 128.

    r_ref  : (W, G) one-hot (1.0 where col == lane // C)  -> segment sums.
    bt_ref : (G, W) its transpose                          -> broadcast back.
    """
    x = x_ref[...].astype(jnp.float32)                                # (TR, W)
    r = r_ref[...]
    bt = bt_ref[...]
    # sum-then-divide mean per C-segment
    mu_seg = jnp.dot(x, r, precision=_HIGHEST,
                     preferred_element_type=jnp.float32) * inv_c      # (TR, G)
    mu = jnp.dot(mu_seg, bt, precision=_HIGHEST,
                 preferred_element_type=jnp.float32)                  # (TR, W)
    d = x - mu
    var_seg = jnp.dot(d * d, r, precision=_HIGHEST,
                      preferred_element_type=jnp.float32) * inv_c     # (TR, G)
    inv_seg = lax.rsqrt(var_seg + _EPS)                               # EUP
    inv = jnp.dot(inv_seg, bt, precision=_HIGHEST,
                  preferred_element_type=jnp.float32)                 # (TR, W)
    y = d * inv * w_ref[...] + b_ref[...]
    o_ref[...] = y.astype(o_ref.dtype)


def _ln_rows_kernel(x_ref, w_ref, b_ref, o_ref):
    """Row path (C % 128 == 0) / generic fallback.  Block: (TR, C)."""
    x = x_ref[...].astype(jnp.float32)                                # (TR, C)
    mu = jnp.mean(x, axis=-1, keepdims=True)
    d = x - mu
    var = jnp.mean(d * d, axis=-1, keepdims=True)
    inv = lax.rsqrt(var + _EPS)
    y = d * inv * w_ref[...] + b_ref[...]
    o_ref[...] = y.astype(o_ref.dtype)


# --------------------------------------------------------------------------- #
# Helpers
# --------------------------------------------------------------------------- #
def _round_up(n, m):
    return -(-n // m) * m


def _pick_row_tile(n_rows, per_row_bytes, *, budget_bytes=24 * 1024 * 1024,
                   max_rows=2048, min_steps=8):
    """Byte-budgeted row tile (multiple of 8) for a cdiv row grid."""
    tr = budget_bytes // max(1, 2 * per_row_bytes)        # x2: double-buffering
    tr = min(tr, max_rows, _round_up(n_rows, 8))
    if n_rows >= min_steps * 8:
        # keep >= min_steps grid steps (pipeline ramp + megacore split)
        tr = min(tr, _round_up(pl.cdiv(n_rows, min_steps), 8))
    return max(8, (tr // 8) * 8)


@functools.lru_cache(maxsize=None)
def _segment_mats(c, group):
    """Cached one-hot segment-reduce (W,G) / broadcast-back (G,W) matrices."""
    width = c * group
    seg = jnp.arange(width, dtype=jnp.int32) // c
    r = (seg[:, None] == jnp.arange(group, dtype=jnp.int32)[None, :])
    r = r.astype(jnp.float32)
    return r, r.T


# --------------------------------------------------------------------------- #
# Public wrapper
# --------------------------------------------------------------------------- #
def with_bias_layer_norm(x, weight, bias):
    """Pallas TPU implementation of WithBias_LayerNorm.forward.

    x: (..., C); weight, bias: (C,).  Output dtype follows the usual
    (x, weight, bias) type promotion.
    """
    orig_shape = x.shape
    C = orig_shape[-1]
    rows = int(math.prod(orig_shape[:-1])) if len(orig_shape) > 1 else 1
    out_dtype = jnp.result_type(x.dtype, weight.dtype, bias.dtype)

    x2 = x.reshape(rows, C)                       # free reshape, native dtype
    w = weight.astype(jnp.float32)
    b = bias.astype(jnp.float32)

    in_isz = jnp.dtype(x.dtype).itemsize
    out_isz = jnp.dtype(out_dtype).itemsize

    group = 128 // math.gcd(C, 128)               # rows packed per kernel row
    width = group * C                             # = lcm(C, 128)

    if 1 < group <= 32 and width <= 2048:
        # ---------------- lane-dense packed path (small C) ------------------
        rows_pad = _round_up(rows, group)
        if rows_pad != rows:
            # only padding ever materialised: up to group-1 extra rows
            x2 = jnp.pad(x2, ((0, rows_pad - rows), (0, 0)))
        packed_rows = rows_pad // group
        xp = x2.reshape(packed_rows, width)       # free reshape

        tr = _pick_row_tile(packed_rows, width * (in_isz + out_isz))
        grid = (pl.cdiv(packed_rows, tr),)

        r_mat, bt_mat = _segment_mats(C, group)
        w_t = jnp.tile(w, group).reshape(1, width)
        b_t = jnp.tile(b, group).reshape(1, width)

        kernel = functools.partial(_ln_packed_kernel, inv_c=1.0 / C)
        out = pl.pallas_call(
            kernel,
            out_shape=jax.ShapeDtypeStruct((packed_rows, width), out_dtype),
            grid_spec=pltpu.PrefetchScalarGridSpec(
                num_scalar_prefetch=0,
                grid=grid,
                in_specs=[
                    pl.BlockSpec((tr, width), lambda i: (i, 0)),       # x
                    pl.BlockSpec((width, group), lambda i: (0, 0)),    # R
                    pl.BlockSpec((group, width), lambda i: (0, 0)),    # R^T
                    pl.BlockSpec((1, width), lambda i: (0, 0)),        # weight
                    pl.BlockSpec((1, width), lambda i: (0, 0)),        # bias
                ],
                out_specs=pl.BlockSpec((tr, width), lambda i: (i, 0)),
            ),
            compiler_params=_COMPILER_PARAMS,
        )(xp, r_mat, bt_mat, w_t, b_t)
        out = out.reshape(rows_pad, C)
        if rows_pad != rows:
            out = out[:rows]
    else:
        # ---------------- row path / generic fallback -----------------------
        # TODO(synk): large C that is not a multiple of 128 takes masked
        # partial stores here; a channel-padded packed layout could recover
        # lane density for those shapes.
        tr = _pick_row_tile(rows, C * (in_isz + out_isz))
        grid = (pl.cdiv(rows, tr),)

        out = pl.pallas_call(
            _ln_rows_kernel,
            out_shape=jax.ShapeDtypeStruct((rows, C), out_dtype),
            grid_spec=pltpu.PrefetchScalarGridSpec(
                num_scalar_prefetch=0,
                grid=grid,
                in_specs=[
                    pl.BlockSpec((tr, C), lambda i: (i, 0)),           # x
                    pl.BlockSpec((1, C), lambda i: (0, 0)),            # weight
                    pl.BlockSpec((1, C), lambda i: (0, 0)),            # bias
                ],
                out_specs=pl.BlockSpec((tr, C), lambda i: (i, 0)),
            ),
            compiler_params=_COMPILER_PARAMS,
        )(x2, w.reshape(1, C), b.reshape(1, C))

    return out.reshape(orig_shape)


def with_bias_layer_norm_reference(x, weight, bias):
    """Plain-JAX reference matching the PyTorch forward (f32 compute)."""
    xf = x.astype(jnp.float32)
    mu = jnp.mean(xf, axis=-1, keepdims=True)
    var = jnp.mean(jnp.square(xf - mu), axis=-1, keepdims=True)
    return (xf - mu) / jnp.sqrt(var + _EPS) * weight.astype(jnp.float32) \
        + bias.astype(jnp.float32)


if __name__ == "__main__":
    key = jax.random.PRNGKey(0)
    k1, k2, k3, k4, k5 = jax.random.split(key, 5)

    # HINT applies this LayerNorm over (B, H*W, C) tokens; small test shape.
    B, N, C = 2, 16 * 16, 32
    x = jax.random.normal(k1, (B, N, C), jnp.float32)
    weight = 1.0 + 0.1 * jax.random.normal(k2, (C,), jnp.float32)
    bias = 0.1 * jax.random.normal(k3, (C,), jnp.float32)

    out = jax.block_until_ready(with_bias_layer_norm(x, weight, bias))
    ref = with_bias_layer_norm_reference(x, weight, bias)
    assert out.shape == x.shape and out.dtype == jnp.float32
    assert jnp.allclose(out, ref, atol=1e-4, rtol=1e-4), "packed-path mismatch"

    # Generic fallback path (wide lcm(C,128), ragged row count).
    C2 = 200
    x2 = jax.random.normal(k4, (3, 37, C2), jnp.float32)
    w2 = jnp.ones((C2,), jnp.float32)
    b2 = jnp.zeros((C2,), jnp.float32)
    out2 = jax.block_until_ready(with_bias_layer_norm(x2, w2, b2))
    ref2 = with_bias_layer_norm_reference(x2, w2, b2)
    assert jnp.allclose(out2, ref2, atol=1e-4, rtol=1e-4), "fallback mismatch"

    # bf16 activations: in-kernel cast, bf16 output (native-dtype HBM traffic).
    C3 = 48
    x3 = jax.random.normal(k5, (2, 64, C3), jnp.float32).astype(jnp.bfloat16)
    w3 = jnp.ones((C3,), jnp.bfloat16)
    b3 = jnp.zeros((C3,), jnp.bfloat16)
    out3 = jax.block_until_ready(with_bias_layer_norm(x3, w3, b3))
    ref3 = with_bias_layer_norm_reference(x3, w3, b3)
    assert out3.dtype == jnp.bfloat16
    assert jnp.allclose(out3.astype(jnp.float32), ref3, atol=3e-2, rtol=3e-2), \
        "bf16 packed-path mismatch"

    print("KERNEL_OK")
</pallas_src>

<mosaic_0001>
module attributes {stable_mosaic.version = 11 : i64} {
  func.func @_ln_packed_kernel(%arg0: i32, %arg1: memref<16x128xf32, #tpu.memory_space<vmem>>, %arg2: memref<128x4xf32, #tpu.memory_space<vmem>>, %arg3: memref<4x128xf32, #tpu.memory_space<vmem>>, %arg4: memref<1x128xf32, #tpu.memory_space<vmem>>, %arg5: memref<1x128xf32, #tpu.memory_space<vmem>>, %arg6: memref<16x128xf32, #tpu.memory_space<vmem>>) attributes {dimension_semantics = [#tpu.dimension_semantics<parallel>], iteration_bounds = array<i64: 8>, scalar_prefetch = 0 : i64, scratch_operands = 0 : i64, tpu.core_type = #tpu.core_type<tc>, window_params = [{transform_indices = @transform_0, window_bounds = array<i64: 16, 128>}, {pipeline_mode = #tpu.pipeline_mode<synchronous>, transform_indices = @transform_1, window_bounds = array<i64: 128, 4>}, {pipeline_mode = #tpu.pipeline_mode<synchronous>, transform_indices = @transform_2, window_bounds = array<i64: 4, 128>}, {pipeline_mode = #tpu.pipeline_mode<synchronous>, transform_indices = @transform_3, window_bounds = array<i64: 1, 128>}, {pipeline_mode = #tpu.pipeline_mode<synchronous>, transform_indices = @transform_4, window_bounds = array<i64: 1, 128>}, {transform_indices = @transform_5, window_bounds = array<i64: 16, 128>}]} {
    %c0 = arith.constant 0 : index
    %c0_0 = arith.constant 0 : index
    %0 = vector.load %arg1[%c0, %c0_0] : memref<16x128xf32, #tpu.memory_space<vmem>>, vector<16x128xf32>
    %c0_1 = arith.constant 0 : index
    %c0_2 = arith.constant 0 : index
    %1 = vector.load %arg2[%c0_1, %c0_2] : memref<128x4xf32, #tpu.memory_space<vmem>>, vector<128x4xf32>
    %c0_3 = arith.constant 0 : index
    %c0_4 = arith.constant 0 : index
    %2 = vector.load %arg3[%c0_3, %c0_4] : memref<4x128xf32, #tpu.memory_space<vmem>>, vector<4x128xf32>
    %cst = arith.constant dense<0.000000e+00> : vector<16x4xf32>
    %3 = tpu.matmul %0, %1, %cst {dimension_numbers = #tpu.dot_dimension_numbers<[1], [0], [0], [1], [0, 0, 1, 1], [], []>, precision = #tpu.contract_precision<fp32>} : vector<16x128xf32>, vector<128x4xf32>, vector<16x4xf32> -> vector<16x4xf32>
    %cst_5 = arith.constant 3.125000e-02 : f32
    %4 = vector.broadcast %cst_5 : f32 to vector<16x4xf32>
    %5 = arith.mulf %3, %4 : vector<16x4xf32>
    %cst_6 = arith.constant dense<0.000000e+00> : vector<16x128xf32>
    %6 = tpu.matmul %5, %2, %cst_6 {dimension_numbers = #tpu.dot_dimension_numbers<[1], [0], [0], [1], [0, 0, 1, 1], [], []>, precision = #tpu.contract_precision<fp32>} : vector<16x4xf32>, vector<4x128xf32>, vector<16x128xf32> -> vector<16x128xf32>
    %7 = arith.subf %0, %6 : vector<16x128xf32>
    %8 = arith.mulf %7, %7 : vector<16x128xf32>
    %cst_7 = arith.constant dense<0.000000e+00> : vector<16x4xf32>
    %9 = tpu.matmul %8, %1, %cst_7 {dimension_numbers = #tpu.dot_dimension_numbers<[1], [0], [0], [1], [0, 0, 1, 1], [], []>, precision = #tpu.contract_precision<fp32>} : vector<16x128xf32>, vector<128x4xf32>, vector<16x4xf32> -> vector<16x4xf32>
    %cst_8 = arith.constant 3.125000e-02 : f32
    %10 = vector.broadcast %cst_8 : f32 to vector<16x4xf32>
    %11 = arith.mulf %9, %10 : vector<16x4xf32>
    %cst_9 = arith.constant 9.99999974E-6 : f32
    %12 = vector.broadcast %cst_9 : f32 to vector<16x4xf32>
    %13 = arith.addf %11, %12 : vector<16x4xf32>
    %14 = math.rsqrt %13 : vector<16x4xf32>
    %cst_10 = arith.constant dense<0.000000e+00> : vector<16x128xf32>
    %15 = tpu.matmul %14, %2, %cst_10 {dimension_numbers = #tpu.dot_dimension_numbers<[1], [0], [0], [1], [0, 0, 1, 1], [], []>, precision = #tpu.contract_precision<fp32>} : vector<16x4xf32>, vector<4x128xf32>, vector<16x128xf32> -> vector<16x128xf32>
    %16 = arith.mulf %7, %15 : vector<16x128xf32>
    %c0_11 = arith.constant 0 : index
    %c0_12 = arith.constant 0 : index
    %17 = vector.load %arg4[%c0_11, %c0_12] : memref<1x128xf32, #tpu.memory_space<vmem>>, vector<1x128xf32>
    %18 = vector.broadcast %17 : vector<1x128xf32> to vector<16x128xf32>
    %19 = arith.mulf %16, %18 : vector<16x128xf32>
    %c0_13 = arith.constant 0 : index
    %c0_14 = arith.constant 0 : index
    %20 = vector.load %arg5[%c0_13, %c0_14] : memref<1x128xf32, #tpu.memory_space<vmem>>, vector<1x128xf32>
    %21 = vector.broadcast %20 : vector<1x128xf32> to vector<16x128xf32>
    %22 = arith.addf %19, %21 : vector<16x128xf32>
    %c0_15 = arith.constant 0 : index
    %c0_16 = arith.constant 0 : index
    %23 = vector.load %arg6[%c0_15, %c0_16] : memref<16x128xf32, #tpu.memory_space<vmem>>, vector<16x128xf32>
    tpu.vector_store %arg6[%c0_15, %c0_16], %22 {strides = array<i32>} : memref<16x128xf32, #tpu.memory_space<vmem>>, vector<16x128xf32>,
    return
  }
  func.func @transform_0(%arg0: i32) -> (i32, i32) {
    %c0_i32 = arith.constant 0 : i32
    %c0_i32_0 = arith.constant 0 : i32
    return %arg0, %c0_i32 : i32, i32
  }
  func.func @transform_1(%arg0: i32) -> (i32, i32) {
    %c0_i32 = arith.constant 0 : i32
    %c0_i32_0 = arith.constant 0 : i32
    %c0_i32_1 = arith.constant 0 : i32
    return %c0_i32, %c0_i32_0 : i32, i32
  }
  func.func @transform_2(%arg0: i32) -> (i32, i32) {
    %c0_i32 = arith.constant 0 : i32
    %c0_i32_0 = arith.constant 0 : i32
    %c0_i32_1 = arith.constant 0 : i32
    return %c0_i32, %c0_i32_0 : i32, i32
  }
  func.func @transform_3(%arg0: i32) -> (i32, i32) {
    %c0_i32 = arith.constant 0 : i32
    %c0_i32_0 = arith.constant 0 : i32
    %c0_i32_1 = arith.constant 0 : i32
    return %c0_i32, %c0_i32_0 : i32, i32
  }
  func.func @transform_4(%arg0: i32) -> (i32, i32) {
    %c0_i32 = arith.constant 0 : i32
    %c0_i32_0 = arith.constant 0 : i32
    %c0_i32_1 = arith.constant 0 : i32
    return %c0_i32, %c0_i32_0 : i32, i32
  }
  func.func @transform_5(%arg0: i32) -> (i32, i32) {
    %c0_i32 = arith.constant 0 : i32
    %c0_i32_0 = arith.constant 0 : i32
    return %arg0, %c0_i32 : i32, i32
  }
}

</mosaic_0001>

<llo_original>
// kernel: tpu_custom_call.1
$region0: #{tpu_custom_call.1}
  #allocation0 [shape = 'u32[]', space=smem, size = 0x4, offset = 0x4, fixed_abs, tag = 'smem constant byte address 0x4 - core index']
  #allocation1 [shape = 'u32[72,128]{1,0:T(1,128)}', space=vmem, size = 0x9000, scoped, tag = 'internal scratch']
  %s0 = inlined_call_operand.vmem [shape: f32[128,128], index: 0, kind: input, shape index: {}]
  %s1 = inlined_call_operand.vmem [shape: f32[128,4], index: 1, kind: input, shape index: {}]
  %s2 = inlined_call_operand.vmem [shape: f32[4,128], index: 2, kind: input, shape index: {}]
  %s3 = inlined_call_operand.vmem [shape: f32[1,128], index: 3, kind: input, shape index: {}]
  %s4 = inlined_call_operand.vmem [shape: f32[1,128], index: 4, kind: input, shape index: {}]
  %s5 = inlined_call_operand.hbm [shape: f32[128,128], index: 5, kind: output, shape index: {}]
  %s6 = sld [smem:[#allocation0]]
  $region53: #{tpu_custom_call.1} parent=0
    _
  %s8 = ssub.s32 1, %s6
  %s9 = scalar_select 0, %s8, %s6
  $region1: #{tpu_custom_call.1} parent=0
    #allocation2 [shape = 'u8[16384]{0}', space=vmem, size = 0x4000, scoped, tag = 'output window, operand 0']
    #allocation3 [shape = 's32[2]{0}', space=sflag, size = 0x8, scoped, tag = 'scoped memory for tpu_custom_call.1']
    %10 = vsyncpa [#allocation3], 0
    %s11 = scalar_lea.sflag [#allocation3], 1
    %12 = vsyncpa %s11, 0
    loop: start=0, step=1, limit=10
    $region2: #{tpu_custom_call.1} parent=1 // loop_pre_header
      _
    $region3: #{tpu_custom_call.1} parent=1 // loop_header
      %s14 = sphi 0, %s18
      %p15 = scmp.ge.s32.totalorder %s14, 10
      %s24 = sphi 0, %s26
      %s27 = sphi 0, %s24
      %s28 = sphi 0, %s27
      %s44 = sphi 0, %s28
      %s48 = sphi 0, %s48
      %s50 = sphi 0, %s48
      %s51 = sphi 0, %s50
      %s65 = sphi 0, %s51
      %s69 = sphi 0, %s69
      %s71 = sphi 0, %s69
      %s72 = sphi 0, %s71
      %s86 = sphi 0, %s72
      %s90 = sphi 0, %s90
      %s92 = sphi 0, %s90
      %s93 = sphi 0, %s92
      %s107 = sphi 0, %s93
      %s111 = sphi 0, %s111
      %s113 = sphi 0, %s111
      %s114 = sphi 0, %s113
      %s128 = sphi 0, %s114
      %s134 = sphi 0, %s136
      %s137 = sphi 0, %s134
      %s138 = sphi 0, %s137
      %s154 = sphi 0, %s138
    $region4: #{tpu_custom_call.1} parent=1 // loop_header_branch
      %17 = sbr.rel (%p15) target = $region8
    $region5: #{tpu_custom_call.1} parent=1 // loop_body
      %s19 = ssub.s32 %s14, 1
      %s20 = ssub.s32 %s14, 2
      %s21 = sadd.s32 %s14, 1
      %s22 = ssub.s32 %s14, %s21
      %p23 = scmp.eq.s32.totalorder %s22, 0
      %s25 = sadd.s32 %s24, 1
      %s26 = scalar_select %p23, %s24, %s25
      %p29 = pneg %p23
      %p30 = scmp.eq.s32.totalorder %s14, 7
      %p31 = por %p29, %p30
      %p32 = scmp.ne.s32.totalorder %s24, %s27
      %p33 = scmp.eq.s32.totalorder %s14, 0
      %p34 = por %p32, %p33
      %p35 = scmp.ne.s32.totalorder %s24, %s27
      %p36 = scmp.eq.s32.totalorder %s19, 7
      %p37 = por %p35, %p36
      %p38 = scmp.ne.s32.totalorder %s27, %s28
      %p39 = scmp.eq.s32.totalorder %s19, 0
      %p40 = por %p38, %p39
      %p41 = scmp.ne.s32.totalorder %s27, %s28
      %p42 = scmp.eq.s32.totalorder %s20, 7
      %p43 = por %p41, %p42
      %p45 = scmp.ne.s32.totalorder %s28, %s44
      %p46 = scmp.eq.s32.totalorder %s20, 0
      %p47 = por %p45, %p46
      %s49 = sadd.s32 %s48, 1
      %p52 = scmp.eq.s32.totalorder %s14, 7
      %p53 = scmp.ne.s32.totalorder %s48, %s50
      %p54 = scmp.eq.s32.totalorder %s14, 0
      %p55 = por %p53, %p54
      %p56 = scmp.ne.s32.totalorder %s48, %s50
      %p57 = scmp.eq.s32.totalorder %s19, 7
      %p58 = por %p56, %p57
      %p59 = scmp.ne.s32.totalorder %s50, %s51
      %p60 = scmp.eq.s32.totalorder %s19, 0
      %p61 = por %p59, %p60
      %p62 = scmp.ne.s32.totalorder %s50, %s51
      %p63 = scmp.eq.s32.totalorder %s20, 7
      %p64 = por %p62, %p63
      %p66 = scmp.ne.s32.totalorder %s51, %s65
      %p67 = scmp.eq.s32.totalorder %s20, 0
      %p68 = por %p66, %p67
      %s70 = sadd.s32 %s69, 1
      %p73 = scmp.eq.s32.totalorder %s14, 7
      %p74 = scmp.ne.s32.totalorder %s69, %s71
      %p75 = scmp.eq.s32.totalorder %s14, 0
      %p76 = por %p74, %p75
      %p77 = scmp.ne.s32.totalorder %s69, %s71
      %p78 = scmp.eq.s32.totalorder %s19, 7
      %p79 = por %p77, %p78
      %p80 = scmp.ne.s32.totalorder %s71, %s72
      %p81 = scmp.eq.s32.totalorder %s19, 0
      %p82 = por %p80, %p81
      %p83 = scmp.ne.s32.totalorder %s71, %s72
      %p84 = scmp.eq.s32.totalorder %s20, 7
      %p85 = por %p83, %p84
      %p87 = scmp.ne.s32.totalorder %s72, %s86
      %p88 = scmp.eq.s32.totalorder %s20, 0
      %p89 = por %p87, %p88
      %s91 = sadd.s32 %s90, 1
      %p94 = scmp.eq.s32.totalorder %s14, 7
      %p95 = scmp.ne.s32.totalorder %s90, %s92
      %p96 = scmp.eq.s32.totalorder %s14, 0
      %p97 = por %p95, %p96
      %p98 = scmp.ne.s32.totalorder %s90, %s92
      %p99 = scmp.eq.s32.totalorder %s19, 7
      %p100 = por %p98, %p99
      %p101 = scmp.ne.s32.totalorder %s92, %s93
      %p102 = scmp.eq.s32.totalorder %s19, 0
      %p103 = por %p101, %p102
      %p104 = scmp.ne.s32.totalorder %s92, %s93
      %p105 = scmp.eq.s32.totalorder %s20, 7
      %p106 = por %p104, %p105
      %p108 = scmp.ne.s32.totalorder %s93, %s107
      %p109 = scmp.eq.s32.totalorder %s20, 0
      %p110 = por %p108, %p109
      %s112 = sadd.s32 %s111, 1
      %p115 = scmp.eq.s32.totalorder %s14, 7
      %p116 = scmp.ne.s32.totalorder %s111, %s113
      %p117 = scmp.eq.s32.totalorder %s14, 0
      %p118 = por %p116, %p117
      %p119 = scmp.ne.s32.totalorder %s111, %s113
      %p120 = scmp.eq.s32.totalorder %s19, 7
      %p121 = por %p119, %p120
      %p122 = scmp.ne.s32.totalorder %s113, %s114
      %p123 = scmp.eq.s32.totalorder %s19, 0
      %p124 = por %p122, %p123
      %p125 = scmp.ne.s32.totalorder %s113, %s114
      %p126 = scmp.eq.s32.totalorder %s20, 7
      %p127 = por %p125, %p126
      %p129 = scmp.ne.s32.totalorder %s114, %s128
      %p130 = scmp.eq.s32.totalorder %s20, 0
      %p131 = por %p129, %p130
      %s132 = ssub.s32 %s14, %s21
      %p133 = scmp.eq.s32.totalorder %s132, 0
      %s135 = sadd.s32 %s134, 1
      %s136 = scalar_select %p133, %s134, %s135
      %p139 = pneg %p133
      %p140 = scmp.eq.s32.totalorder %s14, 7
      %p141 = por %p139, %p140
      %p142 = scmp.ne.s32.totalorder %s134, %s137
      %p143 = scmp.eq.s32.totalorder %s14, 0
      %p144 = por %p142, %p143
      %p145 = scmp.ne.s32.totalorder %s134, %s137
      %p146 = scmp.eq.s32.totalorder %s19, 7
      %p147 = por %p145, %p146
      %p148 = scmp.ne.s32.totalorder %s137, %s138
      %p149 = scmp.eq.s32.totalorder %s19, 0
      %p150 = por %p148, %p149
      %p151 = scmp.ne.s32.totalorder %s137, %s138
      %p152 = scmp.eq.s32.totalorder %s20, 7
      %p153 = por %p151, %p152
      %p155 = scmp.ne.s32.totalorder %s138, %s154
      %p156 = scmp.eq.s32.totalorder %s20, 0
      %p157 = por %p155, %p156
      %p158 = scmp.le.s32.totalorder 1, %s14
      %p159 = scmp.lt.s32.totalorder %s14, 9
      %p160 = pnand %p158, %p159
      %p161 = pneg %p160
      // Predicated region
      $region9: #{tpu_custom_call.1} parent=5 // pred_check
        _
      $region10: #{tpu_custom_call.1} parent=5 // pred_check_branch
        %163 = sbr.rel (%p160) target = $region12
      $region11: #{tpu_custom_call.1} parent=5 // pred_region
        %s164 = ssub.s32 %s14, 1
        // Predicated region
        $region13: #{tpu_custom_call.1} parent=11 // pred_check
          %p165 = pneg %p61
        $region14: #{tpu_custom_call.1} parent=11 // pred_check_branch
          %167 = sbr.rel (%p165) target = $region16
        $region15: #{tpu_custom_call.1} parent=11 // pred_region
          _
        $region16: #{tpu_custom_call.1} parent=11 // pred_fallthru
          _
        // Predicated region
        $region17: #{tpu_custom_call.1} parent=11 // pred_check
          %p168 = pneg %p82
        $region18: #{tpu_custom_call.1} parent=11 // pred_check_branch
          %170 = sbr.rel (%p168) target = $region20
        $region19: #{tpu_custom_call.1} parent=11 // pred_region
          _
        $region20: #{tpu_custom_call.1} parent=11 // pred_fallthru
          _
        // Predicated region
        $region21: #{tpu_custom_call.1} parent=11 // pred_check
          %p171 = pneg %p103
        $region22: #{tpu_custom_call.1} parent=11 // pred_check_branch
          %173 = sbr.rel (%p171) target = $region24
        $region23: #{tpu_custom_call.1} parent=11 // pred_region
          _
        $region24: #{tpu_custom_call.1} parent=11 // pred_fallthru
          _
        // Predicated region
        $region25: #{tpu_custom_call.1} parent=11 // pred_check
          %p174 = pneg %p124
        $region26: #{tpu_custom_call.1} parent=11 // pred_check_branch
          %176 = sbr.rel (%p174) target = $region28
        $region27: #{tpu_custom_call.1} parent=11 // pred_region
          _
        $region28: #{tpu_custom_call.1} parent=11 // pred_fallthru
          _
      $region12: #{tpu_custom_call.1} parent=5 // pred_fallthru
        _
      %p177 = scmp.lt.s32.totalorder %s14, 8
      // Predicated region
      $region29: #{tpu_custom_call.1} parent=5 // pred_check
        %p178 = pneg %p177
      $region30: #{tpu_custom_call.1} parent=5 // pred_check_branch
        %180 = sbr.rel (%p178) target = $region32
      $region31: #{tpu_custom_call.1} parent=5 // pred_region
        // Predicated region
        $region33: #{tpu_custom_call.1} parent=31 // pred_check
          %p181 = pneg %p34
        $region34: #{tpu_custom_call.1} parent=31 // pred_check_branch
          %183 = sbr.rel (%p181) target = $region36
        $region35: #{tpu_custom_call.1} parent=31 // pred_region
          %s184 = smul.u32 2, %s14
          %p185 = scmp.lt.s32.totalorder %s184, 15
          %s186 = scalar_select %p185, %s184, 15
          %s187 = smul.addr %s186, 8
          %s188 = scalar_lea.vmem %s0, %s187
          %s189 = smul.u32 2, %s14
        $region36: #{tpu_custom_call.1} parent=31 // pred_fallthru
          _
      $region32: #{tpu_custom_call.1} parent=5 // pred_fallthru
        _
      %p190 = scmp.le.s32.totalorder 1, %s14
      %p191 = scmp.lt.s32.totalorder %s14, 9
      %p192 = pnand %p190, %p191
      %p193 = pneg %p192
      // Predicated region
      $region37: #{tpu_custom_call.1} parent=5 // pred_check
        _
      $region38: #{tpu_custom_call.1} parent=5 // pred_check_branch
        %195 = sbr.rel (%p192) target = $region40
      $region39: #{tpu_custom_call.1} parent=5 // pred_region
        %s196 = ssub.s32 %s14, 1
        %s197 = smul.u32 2, %s19
        %p198 = scmp.lt.s32.totalorder %s197, 15
        %s199 = scalar_select %p198, %s197, 15
        %s200 = smul.addr %s199, 8
        %s201 = scalar_lea.vmem %s0, %s200
        %p202 = pneg %p40
        %p203 = pneg %p37
        %p204 = pneg %p61
        %p205 = pneg %p58
        %p206 = pneg %p82
        %p207 = pneg %p79
        %p208 = pneg %p103
        %p209 = pneg %p100
        %p210 = pneg %p124
        %p211 = pneg %p121
        %p212 = pneg %p150
        %p213 = pneg %p147
        %s214 = sand.u32 %s137, 1
        %s215 = scalar_lea.sflag [#allocation3], %s214
        %s216 = sand.u32 %s137, 1
        %s217 = smul.addr %s216, 16
        %s218 = scalar_lea.vmem [#allocation2], %s217
        %s219 = smul.u32 2, %s19
        %p220 = scmp.lt.s32.totalorder %s219, 15
        %s221 = scalar_select %p220, %s219, 15
        %s222 = smul.addr %s221, 8
        %s223 = scalar_lea.vmem %s0, %s222
        %s224 = smul.u32 2, %s19
        %s225 = smul.u32 2, %s19
        %v226 = vld [vmem:[%s223] sm:$0xff]
        %v227 = vld [vmem:[%s223 + $0x8] sm:$0xff]
        %v228 = vld [vmem:[%s1] sm:$0xff]
        %v229 = vld [vmem:[%s1 + $0x8] sm:$0xff]
        %v230 = vld [vmem:[%s1 + $0x10] sm:$0xff]
        %v231 = vld [vmem:[%s1 + $0x18] sm:$0xff]
        %v232 = vld [vmem:[%s1 + $0x20] sm:$0xff]
        %v233 = vld [vmem:[%s1 + $0x28] sm:$0xff]
        %v234 = vld [vmem:[%s1 + $0x30] sm:$0xff]
        %v235 = vld [vmem:[%s1 + $0x38] sm:$0xff]
        %v236 = vld [vmem:[%s1 + $0x40] sm:$0xff]
        %v237 = vld [vmem:[%s1 + $0x48] sm:$0xff]
        %v238 = vld [vmem:[%s1 + $0x50] sm:$0xff]
        %v239 = vld [vmem:[%s1 + $0x58] sm:$0xff]
        %v240 = vld [vmem:[%s1 + $0x60] sm:$0xff]
        %v241 = vld [vmem:[%s1 + $0x68] sm:$0xff]
        %v242 = vld [vmem:[%s1 + $0x70] sm:$0xff]
        %v243 = vld [vmem:[%s1 + $0x78] sm:$0xff]
        %v244 = vld [vmem:[%s2] sm:$0xf]
        %v245 = vand.u32 %v243, 4294901760
        %246 = vmatpush.msra.mxu0 %v245
        %v247 = vand.u32 %v242, 4294901760
        %248 = vmatpush.msra.mxu0 %v247
        %v249 = vand.u32 %v241, 4294901760
        %250 = vmatpush.msra.mxu0 %v249
        %v251 = vand.u32 %v240, 4294901760
        %252 = vmatpush.msra.mxu0 %v251
        %v253 = vand.u32 %v239, 4294901760
        %254 = vmatpush.msra.mxu0 %v253
        %v255 = vand.u32 %v238, 4294901760
        %256 = vmatpush.msra.mxu0 %v255
        %v257 = vand.u32 %v237, 4294901760
        %258 = vmatpush.msra.mxu0 %v257
        %v259 = vand.u32 %v236, 4294901760
        %260 = vmatpush.msra.mxu0 %v259
        %v261 = vand.u32 %v235, 4294901760
        %262 = vmatpush.msra.mxu0 %v261
        %v263 = vand.u32 %v234, 4294901760
        %264 = vmatpush.msra.mxu0 %v263
        %v265 = vand.u32 %v233, 4294901760
        %266 = vmatpush.msra.mxu0 %v265
        %v267 = vand.u32 %v232, 4294901760
        %268 = vmatpush.msra.mxu0 %v267
        %v269 = vand.u32 %v231, 4294901760
        %270 = vmatpush.msra.mxu0 %v269
        %v271 = vand.u32 %v230, 4294901760
        %272 = vmatpush.msra.mxu0 %v271
        %v273 = vand.u32 %v229, 4294901760
        %274 = vmatpush.msra.mxu0 %v273
        %v275 = vand.u32 %v228, 4294901760
        %276 = vmatpush.msra.mxu0 %v275
        %v277 = vand.u32 %v226, 4294901760
        %v278 = vsub.f32 %v226, %v277
        %v279 = vand.u32 %v278, 4294901760
        %v280 = vsub.f32 %v278, %v279
        %v281 = vand.u32 %v280, 4294901760
        %282 = vmatmul.f32.gmra.mxu0 %v281
        %v283 = vpop.f32.mrf.mxu0
        %v284 = vadd.f32 0.0, %v283
        %v285 = vand.u32 %v227, 4294901760
        %v286 = vsub.f32 %v227, %v285
        %v287 = vand.u32 %v286, 4294901760
        %v288 = vsub.f32 %v286, %v287
        %v289 = vand.u32 %v288, 4294901760
        %290 = vmatmul.f32.gmra.mxu0 %v289
        %v291 = vpop.f32.mrf.mxu0
        %v292 = vadd.f32 0.0, %v291
        %293 = vdwg.mxu0
        %v294 = vand.u32 %v243, 4294901760
        %v295 = vsub.f32 %v243, %v294
        %v296 = vand.u32 %v295, 4294901760
        %v297 = vsub.f32 %v295, %v296
        %v298 = vand.u32 %v297, 4294901760
        %299 = vmatpush.msra.mxu0 %v298
        %v300 = vand.u32 %v242, 4294901760
        %v301 = vsub.f32 %v242, %v300
        %v302 = vand.u32 %v301, 4294901760
        %v303 = vsub.f32 %v301, %v302
        %v304 = vand.u32 %v303, 4294901760
        %305 = vmatpush.msra.mxu0 %v304
        %v306 = vand.u32 %v241, 4294901760
        %v307 = vsub.f32 %v241, %v306
        %v308 = vand.u32 %v307, 4294901760
        %v309 = vsub.f32 %v307, %v308
        %v310 = vand.u32 %v309, 4294901760
        %311 = vmatpush.msra.mxu0 %v310
        %v312 = vand.u32 %v240, 4294901760
        %v313 = vsub.f32 %v240, %v312
        %v314 = vand.u32 %v313, 4294901760
        %v315 = vsub.f32 %v313, %v314
        %v316 = vand.u32 %v315, 4294901760
        %317 = vmatpush.msra.mxu0 %v316
        %v318 = vand.u32 %v239, 4294901760
        %v319 = vsub.f32 %v239, %v318
        %v320 = vand.u32 %v319, 4294901760
        %v321 = vsub.f32 %v319, %v320
        %v322 = vand.u32 %v321, 4294901760
        %323 = vmatpush.msra.mxu0 %v322
        %v324 = vand.u32 %v238, 4294901760
        %v325 = vsub.f32 %v238, %v324
        %v326 = vand.u32 %v325, 4294901760
        %v327 = vsub.f32 %v325, %v326
        %v328 = vand.u32 %v327, 4294901760
        %329 = vmatpush.msra.mxu0 %v328
        %v330 = vand.u32 %v237, 4294901760
        %v331 = vsub.f32 %v237, %v330
        %v332 = vand.u32 %v331, 4294901760
        %v333 = vsub.f32 %v331, %v332
        %v334 = vand.u32 %v333, 4294901760
        %335 = vmatpush.msra.mxu0 %v334
        %v336 = vand.u32 %v236, 4294901760
        %v337 = vsub.f32 %v236, %v336
        %v338 = vand.u32 %v337, 4294901760
        %v339 = vsub.f32 %v337, %v338
        %v340 = vand.u32 %v339, 4294901760
        %341 = vmatpush.msra.mxu0 %v340
        %v342 = vand.u32 %v235, 4294901760
        %v343 = vsub.f32 %v235, %v342
        %v344 = vand.u32 %v343, 4294901760
        %v345 = vsub.f32 %v343, %v344
        %v346 = vand.u32 %v345, 4294901760
        %347 = vmatpush.msra.mxu0 %v346
        %v348 = vand.u32 %v234, 4294901760
        %v349 = vsub.f32 %v234, %v348
        %v350 = vand.u32 %v349, 4294901760
        %v351 = vsub.f32 %v349, %v350
        %v352 = vand.u32 %v351, 4294901760
        %353 = vmatpush.msra.mxu0 %v352
        %v354 = vand.u32 %v233, 4294901760
        %v355 = vsub.f32 %v233, %v354
        %v356 = vand.u32 %v355, 4294901760
        %v357 = vsub.f32 %v355, %v356
        %v358 = vand.u32 %v357, 4294901760
        %359 = vmatpush.msra.mxu0 %v358
        %v360 = vand.u32 %v232, 4294901760
        %v361 = vsub.f32 %v232, %v360
        %v362 = vand.u32 %v361, 4294901760
        %v363 = vsub.f32 %v361, %v362
        %v364 = vand.u32 %v363, 4294901760
        %365 = vmatpush.msra.mxu0 %v364
        %v366 = vand.u32 %v231, 4294901760
        %v367 = vsub.f32 %v231, %v366
        %v368 = vand.u32 %v367, 4294901760
        %v369 = vsub.f32 %v367, %v368
        %v370 = vand.u32 %v369, 4294901760
        %371 = vmatpush.msra.mxu0 %v370
        %v372 = vand.u32 %v230, 4294901760
        %v373 = vsub.f32 %v230, %v372
        %v374 = vand.u32 %v373, 4294901760
        %v375 = vsub.f32 %v373, %v374
        %v376 = vand.u32 %v375, 4294901760
        %377 = vmatpush.msra.mxu0 %v376
        %v378 = vand.u32 %v229, 4294901760
        %v379 = vsub.f32 %v229, %v378
        %v380 = vand.u32 %v379, 4294901760
        %v381 = vsub.f32 %v379, %v380
        %v382 = vand.u32 %v381, 4294901760
        %383 = vmatpush.msra.mxu0 %v382
        %v384 = vand.u32 %v228, 4294901760
        %v385 = vsub.f32 %v228, %v384
        %v386 = vand.u32 %v385, 4294901760
        %v387 = vsub.f32 %v385, %v386
        %v388 = vand.u32 %v387, 4294901760
        %389 = vmatpush.msra.mxu0 %v388
        %v390 = vand.u32 %v226, 4294901760
        %391 = vmatmul.f32.gmra.mxu0 %v390
        %v392 = vpop.f32.mrf.mxu0
        %v393 = vadd.f32 %v284, %v392
        %v394 = vand.u32 %v227, 4294901760
        %395 = vmatmul.f32.gmra.mxu0 %v394
        %v396 = vpop.f32.mrf.mxu0
        %v397 = vadd.f32 %v292, %v396
        %398 = vdwg.mxu0
        %v399 = vand.u32 %v243, 4294901760
        %v400 = vsub.f32 %v243, %v399
        %401 = vmatpush.msra.mxu0 %v400
        %v402 = vand.u32 %v242, 4294901760
        %v403 = vsub.f32 %v242, %v402
        %404 = vmatpush.msra.mxu0 %v403
        %v405 = vand.u32 %v241, 4294901760
        %v406 = vsub.f32 %v241, %v405
        %407 = vmatpush.msra.mxu0 %v406
        %v408 = vand.u32 %v240, 4294901760
        %v409 = vsub.f32 %v240, %v408
        %410 = vmatpush.msra.mxu0 %v409
        %v411 = vand.u32 %v239, 4294901760
        %v412 = vsub.f32 %v239, %v411
        %413 = vmatpush.msra.mxu0 %v412
        %v414 = vand.u32 %v238, 4294901760
        %v415 = vsub.f32 %v238, %v414
        %416 = vmatpush.msra.mxu0 %v415
        %v417 = vand.u32 %v237, 4294901760
        %v418 = vsub.f32 %v237, %v417
        %419 = vmatpush.msra.mxu0 %v418
        %v420 = vand.u32 %v236, 4294901760
        %v421 = vsub.f32 %v236, %v420
        %422 = vmatpush.msra.mxu0 %v421
        %v423 = vand.u32 %v235, 4294901760
        %v424 = vsub.f32 %v235, %v423
        %425 = vmatpush.msra.mxu0 %v424
        %v426 = vand.u32 %v234, 4294901760
        %v427 = vsub.f32 %v234, %v426
        %428 = vmatpush.msra.mxu0 %v427
        %v429 = vand.u32 %v233, 4294901760
        %v430 = vsub.f32 %v233, %v429
        %431 = vmatpush.msra.mxu0 %v430
        %v432 = vand.u32 %v232, 4294901760
        %v433 = vsub.f32 %v232, %v432
        %434 = vmatpush.msra.mxu0 %v433
        %v435 = vand.u32 %v231, 4294901760
        %v436 = vsub.f32 %v231, %v435
        %437 = vmatpush.msra.mxu0 %v436
        %v438 = vand.u32 %v230, 4294901760
        %v439 = vsub.f32 %v230, %v438
        %440 = vmatpush.msra.mxu0 %v439
        %v441 = vand.u32 %v229, 4294901760
        %v442 = vsub.f32 %v229, %v441
        %443 = vmatpush.msra.mxu0 %v442
        %v444 = vand.u32 %v228, 4294901760
        %v445 = vsub.f32 %v228, %v444
        %446 = vmatpush.msra.mxu0 %v445
        %v447 = vand.u32 %v226, 4294901760
        %v448 = vsub.f32 %v226, %v447
        %449 = vmatmul.f32.gmra.mxu0 %v448
        %v450 = vpop.f32.mrf.mxu0
        %v451 = vadd.f32 %v393, %v450
        %v452 = vand.u32 %v227, 4294901760
        %v453 = vsub.f32 %v227, %v452
        %454 = vmatmul.f32.gmra.mxu0 %v453
        %v455 = vpop.f32.mrf.mxu0
        %v456 = vadd.f32 %v397, %v455
        %457 = vdwg.mxu0
        %v458 = vand.u32 %v243, 4294901760
        %459 = vmatpush.msra.mxu0 %v458
        %v460 = vand.u32 %v242, 4294901760
        %461 = vmatpush.msra.mxu0 %v460
        %v462 = vand.u32 %v241, 4294901760
        %463 = vmatpush.msra.mxu0 %v462
        %v464 = vand.u32 %v240, 4294901760
        %465 = vmatpush.msra.mxu0 %v464
        %v466 = vand.u32 %v239, 4294901760
        %467 = vmatpush.msra.mxu0 %v466
        %v468 = vand.u32 %v238, 4294901760
        %469 = vmatpush.msra.mxu0 %v468
        %v470 = vand.u32 %v237, 4294901760
        %471 = vmatpush.msra.mxu0 %v470
        %v472 = vand.u32 %v236, 4294901760
        %473 = vmatpush.msra.mxu0 %v472
        %v474 = vand.u32 %v235, 4294901760
        %475 = vmatpush.msra.mxu0 %v474
        %v476 = vand.u32 %v234, 4294901760
        %477 = vmatpush.msra.mxu0 %v476
        %v478 = vand.u32 %v233, 4294901760
        %479 = vmatpush.msra.mxu0 %v478
        %v480 = vand.u32 %v232, 4294901760
        %481 = vmatpush.msra.mxu0 %v480
        %v482 = vand.u32 %v231, 4294901760
        %483 = vmatpush.msra.mxu0 %v482
        %v484 = vand.u32 %v230, 4294901760
        %485 = vmatpush.msra.mxu0 %v484
        %v486 = vand.u32 %v229, 4294901760
        %487 = vmatpush.msra.mxu0 %v486
        %v488 = vand.u32 %v228, 4294901760
        %489 = vmatpush.msra.mxu0 %v488
        %v490 = vand.u32 %v226, 4294901760
        %v491 = vsub.f32 %v226, %v490
        %v492 = vand.u32 %v491, 4294901760
        %493 = vmatmul.f32.gmra.mxu0 %v492
        %v494 = vpop.f32.mrf.mxu0
        %v495 = vadd.f32 %v451, %v494
        %v496 = vand.u32 %v227, 4294901760
        %v497 = vsub.f32 %v227, %v496
        %v498 = vand.u32 %v497, 4294901760
        %499 = vmatmul.f32.gmra.mxu0 %v498
        %v500 = vpop.f32.mrf.mxu0
        %v501 = vadd.f32 %v456, %v500
        %502 = vdwg.mxu0
        %v503 = vand.u32 %v243, 4294901760
        %v504 = vsub.f32 %v243, %v503
        %v505 = vand.u32 %v504, 4294901760
        %506 = vmatpush.msra.mxu0 %v505
        %v507 = vand.u32 %v242, 4294901760
        %v508 = vsub.f32 %v242, %v507
        %v509 = vand.u32 %v508, 4294901760
        %510 = vmatpush.msra.mxu0 %v509
        %v511 = vand.u32 %v241, 4294901760
        %v512 = vsub.f32 %v241, %v511
        %v513 = vand.u32 %v512, 4294901760
        %514 = vmatpush.msra.mxu0 %v513
        %v515 = vand.u32 %v240, 4294901760
        %v516 = vsub.f32 %v240, %v515
        %v517 = vand.u32 %v516, 4294901760
        %518 = vmatpush.msra.mxu0 %v517
        %v519 = vand.u32 %v239, 4294901760
        %v520 = vsub.f32 %v239, %v519
        %v521 = vand.u32 %v520, 4294901760
        %522 = vmatpush.msra.mxu0 %v521
        %v523 = vand.u32 %v238, 4294901760
        %v524 = vsub.f32 %v238, %v523
        %v525 = vand.u32 %v524, 4294901760
        %526 = vmatpush.msra.mxu0 %v525
        %v527 = vand.u32 %v237, 4294901760
        %v528 = vsub.f32 %v237, %v527
        %v529 = vand.u32 %v528, 4294901760
        %530 = vmatpush.msra.mxu0 %v529
        %v531 = vand.u32 %v236, 4294901760
        %v532 = vsub.f32 %v236, %v531
        %v533 = vand.u32 %v532, 4294901760
        %534 = vmatpush.msra.mxu0 %v533
        %v535 = vand.u32 %v235, 4294901760
        %v536 = vsub.f32 %v235, %v535
        %v537 = vand.u32 %v536, 4294901760
        %538 = vmatpush.msra.mxu0 %v537
        %v539 = vand.u32 %v234, 4294901760
        %v540 = vsub.f32 %v234, %v539
        %v541 = vand.u32 %v540, 4294901760
        %542 = vmatpush.msra.mxu0 %v541
        %v543 = vand.u32 %v233, 4294901760
        %v544 = vsub.f32 %v233, %v543
        %v545 = vand.u32 %v544, 4294901760
        %546 = vmatpush.msra.mxu0 %v545
        %v547 = vand.u32 %v232, 4294901760
        %v548 = vsub.f32 %v232, %v547
        %v549 = vand.u32 %v548, 4294901760
        %550 = vmatpush.msra.mxu0 %v549
        %v551 = vand.u32 %v231, 4294901760
        %v552 = vsub.f32 %v231, %v551
        %v553 = vand.u32 %v552, 4294901760
        %554 = vmatpush.msra.mxu0 %v553
        %v555 = vand.u32 %v230, 4294901760
        %v556 = vsub.f32 %v230, %v555
        %v557 = vand.u32 %v556, 4294901760
        %558 = vmatpush.msra.mxu0 %v557
        %v559 = vand.u32 %v229, 4294901760
        %v560 = vsub.f32 %v229, %v559
        %v561 = vand.u32 %v560, 4294901760
        %562 = vmatpush.msra.mxu0 %v561
        %v563 = vand.u32 %v228, 4294901760
        %v564 = vsub.f32 %v228, %v563
        %v565 = vand.u32 %v564, 4294901760
        %566 = vmatpush.msra.mxu0 %v565
        %v567 = vand.u32 %v226, 4294901760
        %568 = vmatmul.f32.gmra.mxu0 %v567
        %v569 = vpop.f32.mrf.mxu0
        %v570 = vadd.f32 %v495, %v569
        %v571 = vand.u32 %v227, 4294901760
        %572 = vmatmul.f32.gmra.mxu0 %v571
        %v573 = vpop.f32.mrf.mxu0
        %v574 = vadd.f32 %v501, %v573
        %575 = vdwg.mxu0
        %v576 = vand.u32 %v243, 4294901760
        %577 = vmatpush.msra.mxu0 %v576
        %v578 = vand.u32 %v242, 4294901760
        %579 = vmatpush.msra.mxu0 %v578
        %v580 = vand.u32 %v241, 4294901760
        %581 = vmatpush.msra.mxu0 %v580
        %v582 = vand.u32 %v240, 4294901760
        %583 = vmatpush.msra.mxu0 %v582
        %v584 = vand.u32 %v239, 4294901760
        %585 = vmatpush.msra.mxu0 %v584
        %v586 = vand.u32 %v238, 4294901760
        %587 = vmatpush.msra.mxu0 %v586
        %v588 = vand.u32 %v237, 4294901760
        %589 = vmatpush.msra.mxu0 %v588
        %v590 = vand.u32 %v236, 4294901760
        %591 = vmatpush.msra.mxu0 %v590
        %v592 = vand.u32 %v235, 4294901760
        %593 = vmatpush.msra.mxu0 %v592
        %v594 = vand.u32 %v234, 4294901760
        %595 = vmatpush.msra.mxu0 %v594
        %v596 = vand.u32 %v233, 4294901760
        %597 = vmatpush.msra.mxu0 %v596
        %v598 = vand.u32 %v232, 4294901760
        %599 = vmatpush.msra.mxu0 %v598
        %v600 = vand.u32 %v231, 4294901760
        %601 = vmatpush.msra.mxu0 %v600
        %v602 = vand.u32 %v230, 4294901760
        %603 = vmatpush.msra.mxu0 %v602
        %v604 = vand.u32 %v229, 4294901760
        %605 = vmatpush.msra.mxu0 %v604
        %v606 = vand.u32 %v228, 4294901760
        %607 = vmatpush.msra.mxu0 %v606
        %v608 = vand.u32 %v226, 4294901760
        %609 = vmatmul.f32.gmra.mxu0 %v608
        %v610 = vpop.f32.mrf.mxu0
        %v611 = vadd.f32 %v570, %v610
        %v612 = vand.u32 %v227, 4294901760
        %613 = vmatmul.f32.gmra.mxu0 %v612
        %v614 = vpop.f32.mrf.mxu0
        %v615 = vadd.f32 %v574, %v614
        %616 = vdwg.mxu0
        %v617 = vmul.f32 %v611, 0.03125
        %v618 = vmul.f32 %v615, 0.03125
        %vm619 = vcmask 31744
        %v621 = vsel %vm619, %v617, 0
        %v624 = vsel %vm619, %v618, 0
        %vm626 = vcmask 1043456
        %v628 = vsel %vm626, %v244, 0
        %630 = vmatpush.msra.mxu0 0.0
        %631 = vmatpush.msra.mxu0 0.0
        %632 = vmatpush.msra.mxu0 0.0
        %633 = vmatpush.msra.mxu0 0.0
        %634 = vmatpush.msra.mxu0 0.0
        %635 = vmatpush.msra.mxu0 0.0
        %636 = vmatpush.msra.mxu0 0.0
        %637 = vmatpush.msra.mxu0 0.0
        %638 = vmatpush.msra.mxu0 0.0
        %639 = vmatpush.msra.mxu0 0.0
        %640 = vmatpush.msra.mxu0 0.0
        %641 = vmatpush.msra.mxu0 0.0
        %642 = vmatpush.msra.mxu0 0.0
        %643 = vmatpush.msra.mxu0 0.0
        %644 = vmatpush.msra.mxu0 0.0
        %v645 = vand.u32 %v628, 4294901760
        %646 = vmatpush.msra.mxu0 %v645
        %v647 = vand.u32 %v621, 4294901760
        %v648 = vsub.f32 %v621, %v647
        %v649 = vand.u32 %v648, 4294901760
        %v650 = vsub.f32 %v648, %v649
        %v651 = vand.u32 %v650, 4294901760
        %652 = vmatmul.f32.gmra.mxu0 %v651
        %v653 = vpop.f32.mrf.mxu0
        %v654 = vadd.f32 0.0, %v653
        %v655 = vand.u32 %v624, 4294901760
        %v656 = vsub.f32 %v624, %v655
        %v657 = vand.u32 %v656, 4294901760
        %v658 = vsub.f32 %v656, %v657
        %v659 = vand.u32 %v658, 4294901760
        %660 = vmatmul.f32.gmra.mxu0 %v659
        %v661 = vpop.f32.mrf.mxu0
        %v662 = vadd.f32 0.0, %v661
        %663 = vdwg.mxu0
        %664 = vmatpush.msra.mxu0 0.0
        %665 = vmatpush.msra.mxu0 0.0
        %666 = vmatpush.msra.mxu0 0.0
        %667 = vmatpush.msra.mxu0 0.0
        %668 = vmatpush.msra.mxu0 0.0
        %669 = vmatpush.msra.mxu0 0.0
        %670 = vmatpush.msra.mxu0 0.0
        %671 = vmatpush.msra.mxu0 0.0
        %672 = vmatpush.msra.mxu0 0.0
        %673 = vmatpush.msra.mxu0 0.0
        %674 = vmatpush.msra.mxu0 0.0
        %675 = vmatpush.msra.mxu0 0.0
        %676 = vmatpush.msra.mxu0 0.0
        %677 = vmatpush.msra.mxu0 0.0
        %678 = vmatpush.msra.mxu0 0.0
        %v679 = vand.u32 %v628, 4294901760
        %v680 = vsub.f32 %v628, %v679
        %v681 = vand.u32 %v680, 4294901760
        %v682 = vsub.f32 %v680, %v681
        %v683 = vand.u32 %v682, 4294901760
        %684 = vmatpush.msra.mxu0 %v683
        %v685 = vand.u32 %v621, 4294901760
        %686 = vmatmul.f32.gmra.mxu0 %v685
        %v687 = vpop.f32.mrf.mxu0
        %v688 = vadd.f32 %v654, %v687
        %v689 = vand.u32 %v624, 4294901760
        %690 = vmatmul.f32.gmra.mxu0 %v689
        %v691 = vpop.f32.mrf.mxu0
        %v692 = vadd.f32 %v662, %v691
        %693 = vdwg.mxu0
        %694 = vmatpush.msra.mxu0 0.0
        %695 = vmatpush.msra.mxu0 0.0
        %696 = vmatpush.msra.mxu0 0.0
        %697 = vmatpush.msra.mxu0 0.0
        %698 = vmatpush.msra.mxu0 0.0
        %699 = vmatpush.msra.mxu0 0.0
        %700 = vmatpush.msra.mxu0 0.0
        %701 = vmatpush.msra.mxu0 0.0
        %702 = vmatpush.msra.mxu0 0.0
        %703 = vmatpush.msra.mxu0 0.0
        %704 = vmatpush.msra.mxu0 0.0
        %705 = vmatpush.msra.mxu0 0.0
        %706 = vmatpush.msra.mxu0 0.0
        %707 = vmatpush.msra.mxu0 0.0
        %708 = vmatpush.msra.mxu0 0.0
        %v709 = vand.u32 %v628, 4294901760
        %v710 = vsub.f32 %v628, %v709
        %711 = vmatpush.msra.mxu0 %v710
        %v712 = vand.u32 %v621, 4294901760
        %v713 = vsub.f32 %v621, %v712
        %714 = vmatmul.f32.gmra.mxu0 %v713
        %v715 = vpop.f32.mrf.mxu0
        %v716 = vadd.f32 %v688, %v715
        %v717 = vand.u32 %v624, 4294901760
        %v718 = vsub.f32 %v624, %v717
        %719 = vmatmul.f32.gmra.mxu0 %v718
        %v720 = vpop.f32.mrf.mxu0
        %v721 = vadd.f32 %v692, %v720
        %722 = vdwg.mxu0
        %723 = vmatpush.msra.mxu0 0.0
        %724 = vmatpush.msra.mxu0 0.0
        %725 = vmatpush.msra.mxu0 0.0
        %726 = vmatpush.msra.mxu0 0.0
        %727 = vmatpush.msra.mxu0 0.0
        %728 = vmatpush.msra.mxu0 0.0
        %729 = vmatpush.msra.mxu0 0.0
        %730 = vmatpush.msra.mxu0 0.0
        %731 = vmatpush.msra.mxu0 0.0
        %732 = vmatpush.msra.mxu0 0.0
        %733 = vmatpush.msra.mxu0 0.0
        %734 = vmatpush.msra.mxu0 0.0
        %735 = vmatpush.msra.mxu0 0.0
        %736 = vmatpush.msra.mxu0 0.0
        %737 = vmatpush.msra.mxu0 0.0
        %v738 = vand.u32 %v628, 4294901760
        %739 = vmatpush.msra.mxu0 %v738
        %v740 = vand.u32 %v621, 4294901760
        %v741 = vsub.f32 %v621, %v740
        %v742 = vand.u32 %v741, 4294901760
        %743 = vmatmul.f32.gmra.mxu0 %v742
        %v744 = vpop.f32.mrf.mxu0
        %v745 = vadd.f32 %v716, %v744
        %v746 = vand.u32 %v624, 4294901760
        %v747 = vsub.f32 %v624, %v746
        %v748 = vand.u32 %v747, 4294901760
        %749 = vmatmul.f32.gmra.mxu0 %v748
        %v750 = vpop.f32.mrf.mxu0
        %v751 = vadd.f32 %v721, %v750
        %752 = vdwg.mxu0
        %753 = vmatpush.msra.mxu0 0.0
        %754 = vmatpush.msra.mxu0 0.0
        %755 = vmatpush.msra.mxu0 0.0
        %756 = vmatpush.msra.mxu0 0.0
        %757 = vmatpush.msra.mxu0 0.0
        %758 = vmatpush.msra.mxu0 0.0
        %759 = vmatpush.msra.mxu0 0.0
        %760 = vmatpush.msra.mxu0 0.0
        %761 = vmatpush.msra.mxu0 0.0
        %762 = vmatpush.msra.mxu0 0.0
        %763 = vmatpush.msra.mxu0 0.0
        %764 = vmatpush.msra.mxu0 0.0
        %765 = vmatpush.msra.mxu0 0.0
        %766 = vmatpush.msra.mxu0 0.0
        %767 = vmatpush.msra.mxu0 0.0
        %v768 = vand.u32 %v628, 4294901760
        %v769 = vsub.f32 %v628, %v768
        %v770 = vand.u32 %v769, 4294901760
        %771 = vmatpush.msra.mxu0 %v770
        %v772 = vand.u32 %v621, 4294901760
        %773 = vmatmul.f32.gmra.mxu0 %v772
        %v774 = vpop.f32.mrf.mxu0
        %v775 = vadd.f32 %v745, %v774
        %v776 = vand.u32 %v624, 4294901760
        %777 = vmatmul.f32.gmra.mxu0 %v776
        %v778 = vpop.f32.mrf.mxu0
        %v779 = vadd.f32 %v751, %v778
        %780 = vdwg.mxu0
        %781 = vmatpush.msra.mxu0 0.0
        %782 = vmatpush.msra.mxu0 0.0
        %783 = vmatpush.msra.mxu0 0.0
        %784 = vmatpush.msra.mxu0 0.0
        %785 = vmatpush.msra.mxu0 0.0
        %786 = vmatpush.msra.mxu0 0.0
        %787 = vmatpush.msra.mxu0 0.0
        %788 = vmatpush.msra.mxu0 0.0
        %789 = vmatpush.msra.mxu0 0.0
        %790 = vmatpush.msra.mxu0 0.0
        %791 = vmatpush.msra.mxu0 0.0
        %792 = vmatpush.msra.mxu0 0.0
        %793 = vmatpush.msra.mxu0 0.0
        %794 = vmatpush.msra.mxu0 0.0
        %795 = vmatpush.msra.mxu0 0.0
        %v796 = vand.u32 %v628, 4294901760
        %797 = vmatpush.msra.mxu0 %v796
        %v798 = vand.u32 %v621, 4294901760
        %799 = vmatmul.f32.gmra.mxu0 %v798
        %v800 = vpop.f32.mrf.mxu0
        %v801 = vadd.f32 %v775, %v800
        %v802 = vand.u32 %v624, 4294901760
        %803 = vmatmul.f32.gmra.mxu0 %v802
        %v804 = vpop.f32.mrf.mxu0
        %v805 = vadd.f32 %v779, %v804
        %806 = vdwg.mxu0
        %v807 = vsub.f32 %v226, %v801
        %v808 = vsub.f32 %v227, %v805
        %v809 = vmul.f32 %v807, %v807
        %v810 = vmul.f32 %v808, %v808
        %v811 = vand.u32 %v243, 4294901760
        %812 = vmatpush.msra.mxu0 %v811
        %v813 = vand.u32 %v242, 4294901760
        %814 = vmatpush.msra.mxu0 %v813
        %v815 = vand.u32 %v241, 4294901760
        %816 = vmatpush.msra.mxu0 %v815
        %v817 = vand.u32 %v240, 4294901760
        %818 = vmatpush.msra.mxu0 %v817
        %v819 = vand.u32 %v239, 4294901760
        %820 = vmatpush.msra.mxu0 %v819
        %v821 = vand.u32 %v238, 4294901760
        %822 = vmatpush.msra.mxu0 %v821
        %v823 = vand.u32 %v237, 4294901760
        %824 = vmatpush.msra.mxu0 %v823
        %v825 = vand.u32 %v236, 4294901760
        %826 = vmatpush.msra.mxu0 %v825
        %v827 = vand.u32 %v235, 4294901760
        %828 = vmatpush.msra.mxu0 %v827
        %v829 = vand.u32 %v234, 4294901760
        %830 = vmatpush.msra.mxu0 %v829
        %v831 = vand.u32 %v233, 4294901760
        %832 = vmatpush.msra.mxu0 %v831
        %v833 = vand.u32 %v232, 4294901760
        %834 = vmatpush.msra.mxu0 %v833
        %v835 = vand.u32 %v231, 4294901760
        %836 = vmatpush.msra.mxu0 %v835
        %v837 = vand.u32 %v230, 4294901760
        %838 = vmatpush.msra.mxu0 %v837
        %v839 = vand.u32 %v229, 4294901760
        %840 = vmatpush.msra.mxu0 %v839
        %v841 = vand.u32 %v228, 4294901760
        %842 = vmatpush.msra.mxu0 %v841
        %v843 = vand.u32 %v809, 4294901760
        %v844 = vsub.f32 %v809, %v843
        %v845 = vand.u32 %v844, 4294901760
        %v846 = vsub.f32 %v844, %v845
        %v847 = vand.u32 %v846, 4294901760
        %848 = vmatmul.f32.gmra.mxu0 %v847
        %v849 = vpop.f32.mrf.mxu0
        %v850 = vadd.f32 0.0, %v849
        %v851 = vand.u32 %v810, 4294901760
        %v852 = vsub.f32 %v810, %v851
        %v853 = vand.u32 %v852, 4294901760
        %v854 = vsub.f32 %v852, %v853
        %v855 = vand.u32 %v854, 4294901760
        %856 = vmatmul.f32.gmra.mxu0 %v855
        %v857 = vpop.f32.mrf.mxu0
        %v858 = vadd.f32 0.0, %v857
        %859 = vdwg.mxu0
        %v860 = vand.u32 %v243, 4294901760
        %v861 = vsub.f32 %v243, %v860
        %v862 = vand.u32 %v861, 4294901760
        %v863 = vsub.f32 %v861, %v862
        %v864 = vand.u32 %v863, 4294901760
        %865 = vmatpush.msra.mxu0 %v864
        %v866 = vand.u32 %v242, 4294901760
        %v867 = vsub.f32 %v242, %v866
        %v868 = vand.u32 %v867, 4294901760
        %v869 = vsub.f32 %v867, %v868
        %v870 = vand.u32 %v869, 4294901760
        %871 = vmatpush.msra.mxu0 %v870
        %v872 = vand.u32 %v241, 4294901760
        %v873 = vsub.f32 %v241, %v872
        %v874 = vand.u32 %v873, 4294901760
        %v875 = vsub.f32 %v873, %v874
        %v876 = vand.u32 %v875, 4294901760
        %877 = vmatpush.msra.mxu0 %v876
        %v878 = vand.u32 %v240, 4294901760
        %v879 = vsub.f32 %v240, %v878
        %v880 = vand.u32 %v879, 4294901760
        %v881 = vsub.f32 %v879, %v880
        %v882 = vand.u32 %v881, 4294901760
        %883 = vmatpush.msra.mxu0 %v882
        %v884 = vand.u32 %v239, 4294901760
        %v885 = vsub.f32 %v239, %v884
        %v886 = vand.u32 %v885, 4294901760
        %v887 = vsub.f32 %v885, %v886
        %v888 = vand.u32 %v887, 4294901760
        %889 = vmatpush.msra.mxu0 %v888
        %v890 = vand.u32 %v238, 4294901760
        %v891 = vsub.f32 %v238, %v890
        %v892 = vand.u32 %v891, 4294901760
        %v893 = vsub.f32 %v891, %v892
        %v894 = vand.u32 %v893, 4294901760
        %895 = vmatpush.msra.mxu0 %v894
        %v896 = vand.u32 %v237, 4294901760
        %v897 = vsub.f32 %v237, %v896
        %v898 = vand.u32 %v897, 4294901760
        %v899 = vsub.f32 %v897, %v898
        %v900 = vand.u32 %v899, 4294901760
        %901 = vmatpush.msra.mxu0 %v900
        %v902 = vand.u32 %v236, 4294901760
        %v903 = vsub.f32 %v236, %v902
        %v904 = vand.u32 %v903, 4294901760
        %v905 = vsub.f32 %v903, %v904
        %v906 = vand.u32 %v905, 4294901760
        %907 = vmatpush.msra.mxu0 %v906
        %v908 = vand.u32 %v235, 4294901760
        %v909 = vsub.f32 %v235, %v908
        %v910 = vand.u32 %v909, 4294901760
        %v911 = vsub.f32 %v909, %v910
        %v912 = vand.u32 %v911, 4294901760
        %913 = vmatpush.msra.mxu0 %v912
        %v914 = vand.u32 %v234, 4294901760
        %v915 = vsub.f32 %v234, %v914
        %v916 = vand.u32 %v915, 4294901760
        %v917 = vsub.f32 %v915, %v916
        %v918 = vand.u32 %v917, 4294901760
        %919 = vmatpush.msra.mxu0 %v918
        %v920 = vand.u32 %v233, 4294901760
        %v921 = vsub.f32 %v233, %v920
        %v922 = vand.u32 %v921, 4294901760
        %v923 = vsub.f32 %v921, %v922
        %v924 = vand.u32 %v923, 4294901760
        %925 = vmatpush.msra.mxu0 %v924
        %v926 = vand.u32 %v232, 4294901760
        %v927 = vsub.f32 %v232, %v926
        %v928 = vand.u32 %v927, 4294901760
        %v929 = vsub.f32 %v927, %v928
        %v930 = vand.u32 %v929, 4294901760
        %931 = vmatpush.msra.mxu0 %v930
        %v932 = vand.u32 %v231, 4294901760
        %v933 = vsub.f32 %v231, %v932
        %v934 = vand.u32 %v933, 4294901760
        %v935 = vsub.f32 %v933, %v934
        %v936 = vand.u32 %v935, 4294901760
        %937 = vmatpush.msra.mxu0 %v936
        %v938 = vand.u32 %v230, 4294901760
        %v939 = vsub.f32 %v230, %v938
        %v940 = vand.u32 %v939, 4294901760
        %v941 = vsub.f32 %v939, %v940
        %v942 = vand.u32 %v941, 4294901760
        %943 = vmatpush.msra.mxu0 %v942
        %v944 = vand.u32 %v229, 4294901760
        %v945 = vsub.f32 %v229, %v944
        %v946 = vand.u32 %v945, 4294901760
        %v947 = vsub.f32 %v945, %v946
        %v948 = vand.u32 %v947, 4294901760
        %949 = vmatpush.msra.mxu0 %v948
        %v950 = vand.u32 %v228, 4294901760
        %v951 = vsub.f32 %v228, %v950
        %v952 = vand.u32 %v951, 4294901760
        %v953 = vsub.f32 %v951, %v952
        %v954 = vand.u32 %v953, 4294901760
        %955 = vmatpush.msra.mxu0 %v954
        %v956 = vand.u32 %v809, 4294901760
        %957 = vmatmul.f32.gmra.mxu0 %v956
        %v958 = vpop.f32.mrf.mxu0
        %v959 = vadd.f32 %v850, %v958
        %v960 = vand.u32 %v810, 4294901760
        %961 = vmatmul.f32.gmra.mxu0 %v960
        %v962 = vpop.f32.mrf.mxu0
        %v963 = vadd.f32 %v858, %v962
        %964 = vdwg.mxu0
        %v965 = vand.u32 %v243, 4294901760
        %v966 = vsub.f32 %v243, %v965
        %967 = vmatpush.msra.mxu0 %v966
        %v968 = vand.u32 %v242, 4294901760
        %v969 = vsub.f32 %v242, %v968
        %970 = vmatpush.msra.mxu0 %v969
        %v971 = vand.u32 %v241, 4294901760
        %v972 = vsub.f32 %v241, %v971
        %973 = vmatpush.msra.mxu0 %v972
        %v974 = vand.u32 %v240, 4294901760
        %v975 = vsub.f32 %v240, %v974
        %976 = vmatpush.msra.mxu0 %v975
        %v977 = vand.u32 %v239, 4294901760
        %v978 = vsub.f32 %v239, %v977
        %979 = vmatpush.msra.mxu0 %v978
        %v980 = vand.u32 %v238, 4294901760
        %v981 = vsub.f32 %v238, %v980
        %982 = vmatpush.msra.mxu0 %v981
        %v983 = vand.u32 %v237, 4294901760
        %v984 = vsub.f32 %v237, %v983
        %985 = vmatpush.msra.mxu0 %v984
        %v986 = vand.u32 %v236, 4294901760
        %v987 = vsub.f32 %v236, %v986
        %988 = vmatpush.msra.mxu0 %v987
        %v989 = vand.u32 %v235, 4294901760
        %v990 = vsub.f32 %v235, %v989
        %991 = vmatpush.msra.mxu0 %v990
        %v992 = vand.u32 %v234, 4294901760
        %v993 = vsub.f32 %v234, %v992
        %994 = vmatpush.msra.mxu0 %v993
        %v995 = vand.u32 %v233, 4294901760
        %v996 = vsub.f32 %v233, %v995
        %997 = vmatpush.msra.mxu0 %v996
        %v998 = vand.u32 %v232, 4294901760
        %v999 = vsub.f32 %v232, %v998
        %1000 = vmatpush.msra.mxu0 %v999
        %v1001 = vand.u32 %v231, 4294901760
        %v1002 = vsub.f32 %v231, %v1001
        %1003 = vmatpush.msra.mxu0 %v1002
        %v1004 = vand.u32 %v230, 4294901760
        %v1005 = vsub.f32 %v230, %v1004
        %1006 = vmatpush.msra.mxu0 %v1005
        %v1007 = vand.u32 %v229, 4294901760
        %v1008 = vsub.f32 %v229, %v1007
        %1009 = vmatpush.msra.mxu0 %v1008
        %v1010 = vand.u32 %v228, 4294901760
        %v1011 = vsub.f32 %v228, %v1010
        %1012 = vmatpush.msra.mxu0 %v1011
        %v1013 = vand.u32 %v809, 4294901760
        %v1014 = vsub.f32 %v809, %v1013
        %1015 = vmatmul.f32.gmra.mxu0 %v1014
        %v1016 = vpop.f32.mrf.mxu0
        %v1017 = vadd.f32 %v959, %v1016
        %v1018 = vand.u32 %v810, 4294901760
        %v1019 = vsub.f32 %v810, %v1018
        %1020 = vmatmul.f32.gmra.mxu0 %v1019
        %v1021 = vpop.f32.mrf.mxu0
        %v1022 = vadd.f32 %v963, %v1021
        %1023 = vdwg.mxu0
        %v1024 = vand.u32 %v243, 4294901760
        %1025 = vmatpush.msra.mxu0 %v1024
        %v1026 = vand.u32 %v242, 4294901760
        %1027 = vmatpush.msra.mxu0 %v1026
        %v1028 = vand.u32 %v241, 4294901760
        %1029 = vmatpush.msra.mxu0 %v1028
        %v1030 = vand.u32 %v240, 4294901760
        %1031 = vmatpush.msra.mxu0 %v1030
        %v1032 = vand.u32 %v239, 4294901760
        %1033 = vmatpush.msra.mxu0 %v1032
        %v1034 = vand.u32 %v238, 4294901760
        %1035 = vmatpush.msra.mxu0 %v1034
        %v1036 = vand.u32 %v237, 4294901760
        %1037 = vmatpush.msra.mxu0 %v1036
        %v1038 = vand.u32 %v236, 4294901760
        %1039 = vmatpush.msra.mxu0 %v1038
        %v1040 = vand.u32 %v235, 4294901760
        %1041 = vmatpush.msra.mxu0 %v1040
        %v1042 = vand.u32 %v234, 4294901760
        %1043 = vmatpush.msra.mxu0 %v1042
        %v1044 = vand.u32 %v233, 4294901760
        %1045 = vmatpush.msra.mxu0 %v1044
        %v1046 = vand.u32 %v232, 4294901760
        %1047 = vmatpush.msra.mxu0 %v1046
        %v1048 = vand.u32 %v231, 4294901760
        %1049 = vmatpush.msra.mxu0 %v1048
        %v1050 = vand.u32 %v230, 4294901760
        %1051 = vmatpush.msra.mxu0 %v1050
        %v1052 = vand.u32 %v229, 4294901760
        %1053 = vmatpush.msra.mxu0 %v1052
        %v1054 = vand.u32 %v228, 4294901760
        %1055 = vmatpush.msra.mxu0 %v1054
        %v1056 = vand.u32 %v809, 4294901760
        %v1057 = vsub.f32 %v809, %v1056
        %v1058 = vand.u32 %v1057, 4294901760
        %1059 = vmatmul.f32.gmra.mxu0 %v1058
        %v1060 = vpop.f32.mrf.mxu0
        %v1061 = vadd.f32 %v1017, %v1060
        %v1062 = vand.u32 %v810, 4294901760
        %v1063 = vsub.f32 %v810, %v1062
        %v1064 = vand.u32 %v1063, 4294901760
        %1065 = vmatmul.f32.gmra.mxu0 %v1064
        %v1066 = vpop.f32.mrf.mxu0
        %v1067 = vadd.f32 %v1022, %v1066
        %1068 = vdwg.mxu0
        %v1069 = vand.u32 %v243, 4294901760
        %v1070 = vsub.f32 %v243, %v1069
        %v1071 = vand.u32 %v1070, 4294901760
        %1072 = vmatpush.msra.mxu0 %v1071
        %v1073 = vand.u32 %v242, 4294901760
        %v1074 = vsub.f32 %v242, %v1073
        %v1075 = vand.u32 %v1074, 4294901760
        %1076 = vmatpush.msra.mxu0 %v1075
        %v1077 = vand.u32 %v241, 4294901760
        %v1078 = vsub.f32 %v241, %v1077
        %v1079 = vand.u32 %v1078, 4294901760
        %1080 = vmatpush.msra.mxu0 %v1079
        %v1081 = vand.u32 %v240, 4294901760
        %v1082 = vsub.f32 %v240, %v1081
        %v1083 = vand.u32 %v1082, 4294901760
        %1084 = vmatpush.msra.mxu0 %v1083
        %v1085 = vand.u32 %v239, 4294901760
        %v1086 = vsub.f32 %v239, %v1085
        %v1087 = vand.u32 %v1086, 4294901760
        %1088 = vmatpush.msra.mxu0 %v1087
        %v1089 = vand.u32 %v238, 4294901760
        %v1090 = vsub.f32 %v238, %v1089
        %v1091 = vand.u32 %v1090, 4294901760
        %1092 = vmatpush.msra.mxu0 %v1091
        %v1093 = vand.u32 %v237, 4294901760
        %v1094 = vsub.f32 %v237, %v1093
        %v1095 = vand.u32 %v1094, 4294901760
        %1096 = vmatpush.msra.mxu0 %v1095
        %v1097 = vand.u32 %v236, 4294901760
        %v1098 = vsub.f32 %v236, %v1097
        %v1099 = vand.u32 %v1098, 4294901760
        %1100 = vmatpush.msra.mxu0 %v1099
        %v1101 = vand.u32 %v235, 4294901760
        %v1102 = vsub.f32 %v235, %v1101
        %v1103 = vand.u32 %v1102, 4294901760
        %1104 = vmatpush.msra.mxu0 %v1103
        %v1105 = vand.u32 %v234, 4294901760
        %v1106 = vsub.f32 %v234, %v1105
        %v1107 = vand.u32 %v1106, 4294901760
        %1108 = vmatpush.msra.mxu0 %v1107
        %v1109 = vand.u32 %v233, 4294901760
        %v1110 = vsub.f32 %v233, %v1109
        %v1111 = vand.u32 %v1110, 4294901760
        %1112 = vmatpush.msra.mxu0 %v1111
        %v1113 = vand.u32 %v232, 4294901760
        %v1114 = vsub.f32 %v232, %v1113
        %v1115 = vand.u32 %v1114, 4294901760
        %1116 = vmatpush.msra.mxu0 %v1115
        %v1117 = vand.u32 %v231, 4294901760
        %v1118 = vsub.f32 %v231, %v1117
        %v1119 = vand.u32 %v1118, 4294901760
        %1120 = vmatpush.msra.mxu0 %v1119
        %v1121 = vand.u32 %v230, 4294901760
        %v1122 = vsub.f32 %v230, %v1121
        %v1123 = vand.u32 %v1122, 4294901760
        %1124 = vmatpush.msra.mxu0 %v1123
        %v1125 = vand.u32 %v229, 4294901760
        %v1126 = vsub.f32 %v229, %v1125
        %v1127 = vand.u32 %v1126, 4294901760
        %1128 = vmatpush.msra.mxu0 %v1127
        %v1129 = vand.u32 %v228, 4294901760
        %v1130 = vsub.f32 %v228, %v1129
        %v1131 = vand.u32 %v1130, 4294901760
        %1132 = vmatpush.msra.mxu0 %v1131
        %v1133 = vand.u32 %v809, 4294901760
        %1134 = vmatmul.f32.gmra.mxu0 %v1133
        %v1135 = vpop.f32.mrf.mxu0
        %v1136 = vadd.f32 %v1061, %v1135
        %v1137 = vand.u32 %v810, 4294901760
        %1138 = vmatmul.f32.gmra.mxu0 %v1137
        %v1139 = vpop.f32.mrf.mxu0
        %v1140 = vadd.f32 %v1067, %v1139
        %1141 = vdwg.mxu0
        %v1142 = vand.u32 %v243, 4294901760
        %1143 = vmatpush.msra.mxu0 %v1142
        %v1144 = vand.u32 %v242, 4294901760
        %1145 = vmatpush.msra.mxu0 %v1144
        %v1146 = vand.u32 %v241, 4294901760
        %1147 = vmatpush.msra.mxu0 %v1146
        %v1148 = vand.u32 %v240, 4294901760
        %1149 = vmatpush.msra.mxu0 %v1148
        %v1150 = vand.u32 %v239, 4294901760
        %1151 = vmatpush.msra.mxu0 %v1150
        %v1152 = vand.u32 %v238, 4294901760
        %1153 = vmatpush.msra.mxu0 %v1152
        %v1154 = vand.u32 %v237, 4294901760
        %1155 = vmatpush.msra.mxu0 %v1154
        %v1156 = vand.u32 %v236, 4294901760
        %1157 = vmatpush.msra.mxu0 %v1156
        %v1158 = vand.u32 %v235, 4294901760
        %1159 = vmatpush.msra.mxu0 %v1158
        %v1160 = vand.u32 %v234, 4294901760
        %1161 = vmatpush.msra.mxu0 %v1160
        %v1162 = vand.u32 %v233, 4294901760
        %1163 = vmatpush.msra.mxu0 %v1162
        %v1164 = vand.u32 %v232, 4294901760
        %1165 = vmatpush.msra.mxu0 %v1164
        %v1166 = vand.u32 %v231, 4294901760
        %1167 = vmatpush.msra.mxu0 %v1166
        %v1168 = vand.u32 %v230, 4294901760
        %1169 = vmatpush.msra.mxu0 %v1168
        %v1170 = vand.u32 %v229, 4294901760
        %1171 = vmatpush.msra.mxu0 %v1170
        %v1172 = vand.u32 %v228, 4294901760
        %1173 = vmatpush.msra.mxu0 %v1172
        %v1174 = vand.u32 %v809, 4294901760
        %1175 = vmatmul.f32.gmra.mxu0 %v1174
        %v1176 = vpop.f32.mrf.mxu0
        %v1177 = vadd.f32 %v1136, %v1176
        %v1178 = vand.u32 %v810, 4294901760
        %1179 = vmatmul.f32.gmra.mxu0 %v1178
        %v1180 = vpop.f32.mrf.mxu0
        %v1181 = vadd.f32 %v1140, %v1180
        %1182 = vdwg.mxu0
        %v1183 = vmul.f32 %v1177, 0.03125
        %v1184 = vmul.f32 %v1181, 0.03125
        %v1185 = vadd.f32 %v1183, 1e-05
        %v1186 = vadd.f32 %v1184, 1e-05
        %v1187 = vrsqrt.pop %v1185
        %v1188 = vmul.f32 %v1187, %v1185
        %v1189 = vmul.f32 %v1188, %v1187
        %v1190 = vmul.f32 0.5, %v1189
        %v1191 = vsub.f32 1.5, %v1190
        %v1192 = vmul.f32 %v1187, %v1191
        %vm1193 = vweird.f32 %v1185
        %vm1194 = vweird.f32 %v1187
        %vm1195 = vmor %vm1193, %vm1194
        %v1196 = vsel %vm1195, %v1187, %v1192
        %v1197 = vrsqrt.pop %v1186
        %v1198 = vmul.f32 %v1197, %v1186
        %v1199 = vmul.f32 %v1198, %v1197
        %v1200 = vmul.f32 0.5, %v1199
        %v1201 = vsub.f32 1.5, %v1200
        %v1202 = vmul.f32 %v1197, %v1201
        %vm1203 = vweird.f32 %v1186
        %vm1204 = vweird.f32 %v1197
        %vm1205 = vmor %vm1203, %vm1204
        %v1206 = vsel %vm1205, %v1197, %v1202
        %v1208 = vsel %vm619, %v1196, 0
        %v1211 = vsel %vm619, %v1206, 0
        %1213 = vmatpush.msra.mxu0 0.0
        %1214 = vmatpush.msra.mxu0 0.0
        %1215 = vmatpush.msra.mxu0 0.0
        %1216 = vmatpush.msra.mxu0 0.0
        %1217 = vmatpush.msra.mxu0 0.0
        %1218 = vmatpush.msra.mxu0 0.0
        %1219 = vmatpush.msra.mxu0 0.0
        %1220 = vmatpush.msra.mxu0 0.0
        %1221 = vmatpush.msra.mxu0 0.0
        %1222 = vmatpush.msra.mxu0 0.0
        %1223 = vmatpush.msra.mxu0 0.0
        %1224 = vmatpush.msra.mxu0 0.0
        %1225 = vmatpush.msra.mxu0 0.0
        %1226 = vmatpush.msra.mxu0 0.0
        %1227 = vmatpush.msra.mxu0 0.0
        %v1228 = vand.u32 %v628, 4294901760
        %1229 = vmatpush.msra.mxu0 %v1228
        %v1230 = vand.u32 %v1208, 4294901760
        %v1231 = vsub.f32 %v1208, %v1230
        %v1232 = vand.u32 %v1231, 4294901760
        %v1233 = vsub.f32 %v1231, %v1232
        %v1234 = vand.u32 %v1233, 4294901760
        %1235 = vmatmul.f32.gmra.mxu0 %v1234
        %v1236 = vpop.f32.mrf.mxu0
        %v1237 = vadd.f32 0.0, %v1236
        %v1238 = vand.u32 %v1211, 4294901760
        %v1239 = vsub.f32 %v1211, %v1238
        %v1240 = vand.u32 %v1239, 4294901760
        %v1241 = vsub.f32 %v1239, %v1240
        %v1242 = vand.u32 %v1241, 4294901760
        %1243 = vmatmul.f32.gmra.mxu0 %v1242
        %v1244 = vpop.f32.mrf.mxu0
        %v1245 = vadd.f32 0.0, %v1244
        %1246 = vdwg.mxu0
        %1247 = vmatpush.msra.mxu0 0.0
        %1248 = vmatpush.msra.mxu0 0.0
        %1249 = vmatpush.msra.mxu0 0.0
        %1250 = vmatpush.msra.mxu0 0.0
        %1251 = vmatpush.msra.mxu0 0.0
        %1252 = vmatpush.msra.mxu0 0.0
        %1253 = vmatpush.msra.mxu0 0.0
        %1254 = vmatpush.msra.mxu0 0.0
        %1255 = vmatpush.msra.mxu0 0.0
        %1256 = vmatpush.msra.mxu0 0.0
        %1257 = vmatpush.msra.mxu0 0.0
        %1258 = vmatpush.msra.mxu0 0.0
        %1259 = vmatpush.msra.mxu0 0.0
        %1260 = vmatpush.msra.mxu0 0.0
        %1261 = vmatpush.msra.mxu0 0.0
        %v1262 = vand.u32 %v628, 4294901760
        %v1263 = vsub.f32 %v628, %v1262
        %v1264 = vand.u32 %v1263, 4294901760
        %v1265 = vsub.f32 %v1263, %v1264
        %v1266 = vand.u32 %v1265, 4294901760
        %1267 = vmatpush.msra.mxu0 %v1266
        %v1268 = vand.u32 %v1208, 4294901760
        %1269 = vmatmul.f32.gmra.mxu0 %v1268
        %v1270 = vpop.f32.mrf.mxu0
        %v1271 = vadd.f32 %v1237, %v1270
        %v1272 = vand.u32 %v1211, 4294901760
        %1273 = vmatmul.f32.gmra.mxu0 %v1272
        %v1274 = vpop.f32.mrf.mxu0
        %v1275 = vadd.f32 %v1245, %v1274
        %1276 = vdwg.mxu0
        %1277 = vmatpush.msra.mxu0 0.0
        %1278 = vmatpush.msra.mxu0 0.0
        %1279 = vmatpush.msra.mxu0 0.0
        %1280 = vmatpush.msra.mxu0 0.0
        %1281 = vmatpush.msra.mxu0 0.0
        %1282 = vmatpush.msra.mxu0 0.0
        %1283 = vmatpush.msra.mxu0 0.0
        %1284 = vmatpush.msra.mxu0 0.0
        %1285 = vmatpush.msra.mxu0 0.0
        %1286 = vmatpush.msra.mxu0 0.0
        %1287 = vmatpush.msra.mxu0 0.0
        %1288 = vmatpush.msra.mxu0 0.0
        %1289 = vmatpush.msra.mxu0 0.0
        %1290 = vmatpush.msra.mxu0 0.0
        %1291 = vmatpush.msra.mxu0 0.0
        %v1292 = vand.u32 %v628, 4294901760
        %v1293 = vsub.f32 %v628, %v1292
        %1294 = vmatpush.msra.mxu0 %v1293
        %v1295 = vand.u32 %v1208, 4294901760
        %v1296 = vsub.f32 %v1208, %v1295
        %1297 = vmatmul.f32.gmra.mxu0 %v1296
        %v1298 = vpop.f32.mrf.mxu0
        %v1299 = vadd.f32 %v1271, %v1298
        %v1300 = vand.u32 %v1211, 4294901760
        %v1301 = vsub.f32 %v1211, %v1300
        %1302 = vmatmul.f32.gmra.mxu0 %v1301
        %v1303 = vpop.f32.mrf.mxu0
        %v1304 = vadd.f32 %v1275, %v1303
        %1305 = vdwg.mxu0
        %1306 = vmatpush.msra.mxu0 0.0
        %1307 = vmatpush.msra.mxu0 0.0
        %1308 = vmatpush.msra.mxu0 0.0
        %1309 = vmatpush.msra.mxu0 0.0
        %1310 = vmatpush.msra.mxu0 0.0
        %1311 = vmatpush.msra.mxu0 0.0
        %1312 = vmatpush.msra.mxu0 0.0
        %1313 = vmatpush.msra.mxu0 0.0
        %1314 = vmatpush.msra.mxu0 0.0
        %1315 = vmatpush.msra.mxu0 0.0
        %1316 = vmatpush.msra.mxu0 0.0
        %1317 = vmatpush.msra.mxu0 0.0
        %1318 = vmatpush.msra.mxu0 0.0
        %1319 = vmatpush.msra.mxu0 0.0
        %1320 = vmatpush.msra.mxu0 0.0
        %v1321 = vand.u32 %v628, 4294901760
        %1322 = vmatpush.msra.mxu0 %v1321
        %v1323 = vand.u32 %v1208, 4294901760
        %v1324 = vsub.f32 %v1208, %v1323
        %v1325 = vand.u32 %v1324, 4294901760
        %1326 = vmatmul.f32.gmra.mxu0 %v1325
        %v1327 = vpop.f32.mrf.mxu0
        %v1328 = vadd.f32 %v1299, %v1327
        %v1329 = vand.u32 %v1211, 4294901760
        %v1330 = vsub.f32 %v1211, %v1329
        %v1331 = vand.u32 %v1330, 4294901760
        %1332 = vmatmul.f32.gmra.mxu0 %v1331
        %v1333 = vpop.f32.mrf.mxu0
        %v1334 = vadd.f32 %v1304, %v1333
        %1335 = vdwg.mxu0
        %1336 = vmatpush.msra.mxu0 0.0
        %1337 = vmatpush.msra.mxu0 0.0
        %1338 = vmatpush.msra.mxu0 0.0
        %1339 = vmatpush.msra.mxu0 0.0
        %1340 = vmatpush.msra.mxu0 0.0
        %1341 = vmatpush.msra.mxu0 0.0
        %1342 = vmatpush.msra.mxu0 0.0
        %1343 = vmatpush.msra.mxu0 0.0
        %1344 = vmatpush.msra.mxu0 0.0
        %1345 = vmatpush.msra.mxu0 0.0
        %1346 = vmatpush.msra.mxu0 0.0
        %1347 = vmatpush.msra.mxu0 0.0
        %1348 = vmatpush.msra.mxu0 0.0
        %1349 = vmatpush.msra.mxu0 0.0
        %1350 = vmatpush.msra.mxu0 0.0
        %v1351 = vand.u32 %v628, 4294901760
        %v1352 = vsub.f32 %v628, %v1351
        %v1353 = vand.u32 %v1352, 4294901760
        %1354 = vmatpush.msra.mxu0 %v1353
        %v1355 = vand.u32 %v1208, 4294901760
        %1356 = vmatmul.f32.gmra.mxu0 %v1355
        %v1357 = vpop.f32.mrf.mxu0
        %v1358 = vadd.f32 %v1328, %v1357
        %v1359 = vand.u32 %v1211, 4294901760
        %1360 = vmatmul.f32.gmra.mxu0 %v1359
        %v1361 = vpop.f32.mrf.mxu0
        %v1362 = vadd.f32 %v1334, %v1361
        %1363 = vdwg.mxu0
        %1364 = vmatpush.msra.mxu0 0.0
        %1365 = vmatpush.msra.mxu0 0.0
        %1366 = vmatpush.msra.mxu0 0.0
        %1367 = vmatpush.msra.mxu0 0.0
        %1368 = vmatpush.msra.mxu0 0.0
        %1369 = vmatpush.msra.mxu0 0.0
        %1370 = vmatpush.msra.mxu0 0.0
        %1371 = vmatpush.msra.mxu0 0.0
        %1372 = vmatpush.msra.mxu0 0.0
        %1373 = vmatpush.msra.mxu0 0.0
        %1374 = vmatpush.msra.mxu0 0.0
        %1375 = vmatpush.msra.mxu0 0.0
        %1376 = vmatpush.msra.mxu0 0.0
        %1377 = vmatpush.msra.mxu0 0.0
        %1378 = vmatpush.msra.mxu0 0.0
        %v1379 = vand.u32 %v628, 4294901760
        %1380 = vmatpush.msra.mxu0 %v1379
        %v1381 = vand.u32 %v1208, 4294901760
        %1382 = vmatmul.f32.gmra.mxu0 %v1381
        %v1383 = vpop.f32.mrf.mxu0
        %v1384 = vadd.f32 %v1358, %v1383
        %v1385 = vand.u32 %v1211, 4294901760
        %1386 = vmatmul.f32.gmra.mxu0 %v1385
        %v1387 = vpop.f32.mrf.mxu0
        %v1388 = vadd.f32 %v1362, %v1387
        %1389 = vdwg.mxu0
        %v1390 = vmul.f32 %v807, %v1384
        %v1391 = vmul.f32 %v808, %v1388
        %v1392 = vld [vmem:[%s3] sm:$0x1]
        %v1394 = vperm.slane %v1392, 0
        %v1396 = vmul.f32 %v1390, %v1394
        %v1397 = vmul.f32 %v1391, %v1394
        %v1398 = vld [vmem:[%s4] sm:$0x1]
        %v1400 = vperm.slane %v1398, 0
        %v1402 = vadd.f32 %v1396, %v1400
        %v1403 = vadd.f32 %v1397, %v1400
        %1404 = vst [vmem:[%s218] sm:$0xff] %v1402
        %1405 = vst [vmem:[%s218 + $0x8] sm:$0xff] %v1403
        %s1406 = sand.u32 %s137, 1
        %s1407 = scalar_lea.sflag [#allocation3], %s1406
        %s1408 = sand.u32 %s137, 1
        %s1409 = smul.addr %s1408, 16
        %s1410 = scalar_lea.vmem [#allocation2], %s1409
        // Predicated region
        $region41: #{tpu_custom_call.1} parent=39 // pred_check
          %p1411 = pneg %p147
        $region42: #{tpu_custom_call.1} parent=39 // pred_check_branch
          %1413 = sbr.rel (%p1411) target = $region44
        $region43: #{tpu_custom_call.1} parent=39 // pred_region
          %s1414 = smul.u32 2, %s19
          %1416 = vsyncadd %s1407, 0
          %s1417 = smul.addr %s1414, 8
          %s1418 = scalar_lea.hbm %s5, %s1417
          %s1419 = sshll.u32 %s1410, 4
          %s1420 = int_to_ptr.vmem [resolvable:$true] %s1419
          %s1421 = sshll.u32 %s1418, 4
          %s1422 = int_to_ptr.hbm [resolvable:$true] %s1421
          %1427 = dma.vmem_to_hbm [thread:$0]  %s1420, 256, %s1422, %s1407, 128, 128, 8
        $region44: #{tpu_custom_call.1} parent=39 // pred_fallthru
          _
      $region40: #{tpu_custom_call.1} parent=5 // pred_fallthru
        _
      %p1428 = scmp.le.s32.totalorder 2, %s14
      // Predicated region
      $region45: #{tpu_custom_call.1} parent=5 // pred_check
        %p1429 = pneg %p1428
      $region46: #{tpu_custom_call.1} parent=5 // pred_check_branch
        %1431 = sbr.rel (%p1429) target = $region48
      $region47: #{tpu_custom_call.1} parent=5 // pred_region
        %s1432 = ssub.s32 %s14, 2
        // Predicated region
        $region49: #{tpu_custom_call.1} parent=47 // pred_check
          %p1433 = pneg %p153
        $region50: #{tpu_custom_call.1} parent=47 // pred_check_branch
          %1435 = sbr.rel (%p1433) target = $region52
        $region51: #{tpu_custom_call.1} parent=47 // pred_region
          %s1436 = sand.u32 %s138, 1
          %s1437 = scalar_lea.sflag [#allocation3], %s1436
          %s1438 = sand.u32 %s138, 1
          %s1439 = smul.addr %s1438, 16
          %s1440 = scalar_lea.vmem [#allocation2], %s1439
          %1442 = dma.done %s1437, 256
        $region52: #{tpu_custom_call.1} parent=47 // pred_fallthru
          _
      $region48: #{tpu_custom_call.1} parent=5 // pred_fallthru
        _
    $region6: #{tpu_custom_call.1} parent=1 // loop_footer
      %s18 = sadd.s32 1, %s14
    $region7: #{tpu_custom_call.1} parent=1 // loop_footer_branch
      %13 = sbr.rel target = $region3
    $region8: #{tpu_custom_call.1} parent=1 // loop_exit
      _
    %1443 = vsyncpa [#allocation3], 1
    %s1444 = scalar_lea.sflag [#allocation3], 1
    %1445 = vsyncpa %s1444, 1

</llo_original>
